<compile_context>
chip_gen: v7x
topology: tpu7x:2x2x1
jax: 0.10.0
libtpu: 0.0.40
codegen_flags: <defaults>
</compile_context>

<pallas_src>
import functools

import numpy as np
import jax
import jax.numpy as jnp
from jax import lax
from jax.experimental import pallas as pl
from jax.experimental.pallas import tpu as pltpu


# ------------------------------ fused kernel --------------------------------

def _deep_ritz_fused_kernel(x_ref, w0_ref, wh_ref, bh_ref, w7_ref, b7_ref,
                            o_ref):
    """Whole DeepRitzNet forward for one batch tile, activations as [H, TB].

    x_ref  : [TB, in_dim]   input points tile (rows = batch)
    w0_ref : [H, in_dim]    linear0 weight, PyTorch [out, in] layout
    wh_ref : [6, H, H]      linear1..linear6 weights, PyTorch [out, in] layout
    bh_ref : [7, H, 1]      biases of linear0..linear6 as column vectors
    w7_ref : [1, H]         linear7 weight row
    b7_ref : [1, 1]         linear7 bias
    o_ref  : [1, TB]        lane-dense per-row scalar outputs
    """
    f32 = jnp.float32

    def bias(k):
        # [H, 1] column, broadcast along the lane (batch) axis.
        return bh_ref[k]

    # linear0: contract the feature axes of W0[H,in] and x[TB,in] -> [H, TB].
    y = jnp.tanh(
        lax.dot_general(
            w0_ref[...], x_ref[...],
            dimension_numbers=(((1,), (1,)), ((), ())),
            preferred_element_type=f32,
        ) + bias(0)
    )

    def lin_tanh(a, k):
        # W_k[H,H] @ a[H,TB] -> [H,TB]; MXU matmul, VPU bias add, EUP tanh.
        return jnp.tanh(
            jnp.dot(wh_ref[k - 1], a, preferred_element_type=f32) + bias(k)
        )

    y = y + lin_tanh(lin_tanh(y, 1), 2)
    y = y + lin_tanh(lin_tanh(y, 3), 4)
    y = y + lin_tanh(lin_tanh(y, 5), 6)

    # linear7: [1,H] @ [H,TB] -> [1,TB]; batch lands on lanes -> one unmasked
    # lane-dense store per tile.
    out_row = jnp.dot(w7_ref[...], y, preferred_element_type=f32) + b7_ref[...]
    o_ref[...] = out_row.astype(o_ref.dtype)


# ------------------------------ wrapper --------------------------------------

def deep_ritz_forward(x, params, *, tile_b=512):
    """x: [B, in_dim] f32; params: tuple from pack_params(). Returns [B, 1]."""
    w0, wh, bh, w7, b7 = params
    B, in_dim = x.shape

    # Keep at least two grid steps whenever possible so v7x's two TensorCores
    # both get work under dimension_semantics=("parallel",).
    if B >= 256:
        tile_b = min(tile_b, ((B + 255) // 256) * 128)
    else:
        tile_b = min(tile_b, max(8, ((B + 7) // 8) * 8))

    n_tiles = pl.cdiv(B, tile_b)
    b_pad = n_tiles * tile_b
    if b_pad != B:
        x = jnp.pad(x, ((0, b_pad - B), (0, 0)))

    def _resident(a):
        # Whole (tiny) parameter array, resident in VMEM across all grid steps.
        nd = a.ndim
        return pl.BlockSpec(a.shape, lambda i, nd=nd: (0,) * nd)

    out = pl.pallas_call(
        _deep_ritz_fused_kernel,
        out_shape=jax.ShapeDtypeStruct((1, b_pad), jnp.float32),
        grid=(n_tiles,),
        in_specs=[
            pl.BlockSpec((tile_b, in_dim), lambda i: (i, 0)),
            _resident(w0), _resident(wh), _resident(bh),
            _resident(w7), _resident(b7),
        ],
        out_specs=pl.BlockSpec((1, tile_b), lambda i: (0, i)),
        compiler_params=pltpu.CompilerParams(
            dimension_semantics=("parallel",),
        ),
    )(x, w0, wh, bh, w7, b7)

    # Module contract is [B, 1].  Note: (1, N) -> (N, 1) changes the (8,128)
    # tiling on TPU, so XLA inserts a small relayout copy; negligible here.
    # Callers with very large point batches can consume the lane-dense (1, B)
    # slab directly instead.
    return out.reshape(b_pad, 1)[:B]


# --------------------------- parameter handling ------------------------------

def init_torch_style_params(key, input_dim, hidden_dim):
    """PyTorch nn.Linear layout: weights [out, in], biases [out]."""
    dims = [(hidden_dim, input_dim)] + [(hidden_dim, hidden_dim)] * 6 \
         + [(1, hidden_dim)]
    Ws, bs = [], []
    for (dout, din) in dims:
        key, kw, kb = jax.random.split(key, 3)
        bound = 1.0 / np.sqrt(din)
        Ws.append(jax.random.uniform(kw, (dout, din), jnp.float32, -bound, bound))
        bs.append(jax.random.uniform(kb, (dout,), jnp.float32, -bound, bound))
    return Ws, bs


def pack_params(Ws, bs):
    """One-time consolidation for the kernel.  Weights keep the native PyTorch
    [out, in] layout (no transposes); biases become [H, 1] columns so they
    broadcast along the lane (batch) axis of the [H, TB] activations."""
    H = Ws[1].shape[0]
    w0 = Ws[0]                                                   # [H, in]
    wh = jnp.stack(Ws[1:7], axis=0)                              # [6, H, H]
    bh = jnp.stack([b.reshape(H, 1) for b in bs[:7]], axis=0)    # [7, H, 1]
    w7 = Ws[7]                                                   # [1, H]
    b7 = bs[7].reshape(1, 1)                                     # [1, 1]
    return (w0, wh, bh, w7, b7)


# ------------------------------ reference ------------------------------------

def ref_forward(x, Ws, bs):
    """Pure-JAX reference of DeepRitzNet.forward with PyTorch-layout params."""
    lin = lambda a, k: a @ Ws[k].T + bs[k]
    y = jnp.tanh(lin(x, 0))
    y = y + jnp.tanh(lin(jnp.tanh(lin(y, 1)), 2))
    y = y + jnp.tanh(lin(jnp.tanh(lin(y, 3)), 4))
    y = y + jnp.tanh(lin(jnp.tanh(lin(y, 5)), 6))
    return lin(y, 7)


# --------------------------------- main ---------------------------------------

if __name__ == "__main__":
    # Small shapes consistent with the module's forward.
    input_dim, hidden_dim, batch = 16, 32, 256
    tile_b = 128   # gives a 2-step grid here; raise toward 512-2048 for
                   # production DeepRitz point batches (still keeps grid >= 2)

    key = jax.random.PRNGKey(0)
    kx, kp = jax.random.split(key)
    x = jax.random.normal(kx, (batch, input_dim), dtype=jnp.float32)
    Ws, bs = init_torch_style_params(kp, input_dim, hidden_dim)
    params = pack_params(Ws, bs)

    fwd = jax.jit(functools.partial(deep_ritz_forward, tile_b=tile_b))
    out = jax.block_until_ready(fwd(x, params))

    ref = jax.block_until_ready(ref_forward(x, Ws, bs))
    assert out.shape == (batch, 1)
    np.testing.assert_allclose(np.asarray(out), np.asarray(ref),
                               rtol=1e-4, atol=1e-4)

    # NOTE: DeepRitzNet.cube() is a standalone helper not used by forward().
    print("KERNEL_OK")
</pallas_src>

<mosaic_0001>
module attributes {stable_mosaic.version = 11 : i64} {
  func.func @_deep_ritz_fused_kernel(%arg0: i32, %arg1: memref<128x16xf32, #tpu.memory_space<vmem>>, %arg2: memref<32x16xf32, #tpu.memory_space<vmem>>, %arg3: memref<6x32x32xf32, #tpu.memory_space<vmem>>, %arg4: memref<7x32x1xf32, #tpu.memory_space<vmem>>, %arg5: memref<1x32xf32, #tpu.memory_space<vmem>>, %arg6: memref<1x1xf32, #tpu.memory_space<vmem>>, %arg7: memref<1x128xf32, #tpu.memory_space<vmem>>) attributes {dimension_semantics = [#tpu.dimension_semantics<parallel>], iteration_bounds = array<i64: 2>, scalar_prefetch = 0 : i64, scratch_operands = 0 : i64, tpu.core_type = #tpu.core_type<tc>, window_params = [{transform_indices = @transform_0, window_bounds = array<i64: 128, 16>}, {pipeline_mode = #tpu.pipeline_mode<synchronous>, transform_indices = @transform_1, window_bounds = array<i64: 32, 16>}, {pipeline_mode = #tpu.pipeline_mode<synchronous>, transform_indices = @transform_2, window_bounds = array<i64: 6, 32, 32>}, {pipeline_mode = #tpu.pipeline_mode<synchronous>, transform_indices = @transform_3, window_bounds = array<i64: 7, 32, 1>}, {pipeline_mode = #tpu.pipeline_mode<synchronous>, transform_indices = @transform_4, window_bounds = array<i64: 1, 32>}, {pipeline_mode = #tpu.pipeline_mode<synchronous>, transform_indices = @transform_5, window_bounds = array<i64: 1, 1>}, {transform_indices = @transform_6, window_bounds = array<i64: 1, 128>}]} {
    %c0 = arith.constant 0 : index
    %c0_0 = arith.constant 0 : index
    %0 = vector.load %arg2[%c0, %c0_0] : memref<32x16xf32, #tpu.memory_space<vmem>>, vector<32x16xf32>
    %c0_1 = arith.constant 0 : index
    %c0_2 = arith.constant 0 : index
    %1 = vector.load %arg1[%c0_1, %c0_2] : memref<128x16xf32, #tpu.memory_space<vmem>>, vector<128x16xf32>
    %cst = arith.constant dense<0.000000e+00> : vector<32x128xf32>
    %2 = tpu.matmul %0, %1, %cst {dimension_numbers = #tpu.dot_dimension_numbers<[1], [1], [0], [0], [0, 0, 1, 0], [], []>} : vector<32x16xf32>, vector<128x16xf32>, vector<32x128xf32> -> vector<32x128xf32>
    %c0_3 = arith.constant 0 : index
    %c0_4 = arith.constant 0 : index
    %c0_5 = arith.constant 0 : index
    %3 = vector.load %arg4[%c0_3, %c0_4, %c0_5] : memref<7x32x1xf32, #tpu.memory_space<vmem>>, vector<1x32x1xf32>
    %4 = vector.shape_cast %3 : vector<1x32x1xf32> to vector<32x1xf32>
    %5 = vector.broadcast %4 : vector<32x1xf32> to vector<32x128xf32>
    %6 = arith.addf %2, %5 : vector<32x128xf32>
    %7 = math.tanh %6 : vector<32x128xf32>
    %c0_6 = arith.constant 0 : index
    %c0_7 = arith.constant 0 : index
    %c0_8 = arith.constant 0 : index
    %8 = vector.load %arg3[%c0_6, %c0_7, %c0_8] : memref<6x32x32xf32, #tpu.memory_space<vmem>>, vector<1x32x32xf32>
    %9 = vector.shape_cast %8 : vector<1x32x32xf32> to vector<32x32xf32>
    %cst_9 = arith.constant dense<0.000000e+00> : vector<32x128xf32>
    %10 = tpu.matmul %9, %7, %cst_9 {dimension_numbers = #tpu.dot_dimension_numbers<[1], [0], [0], [1], [0, 0, 1, 1], [], []>} : vector<32x32xf32>, vector<32x128xf32>, vector<32x128xf32> -> vector<32x128xf32>
    %c1 = arith.constant 1 : index
    %c0_10 = arith.constant 0 : index
    %c0_11 = arith.constant 0 : index
    %11 = vector.load %arg4[%c1, %c0_10, %c0_11] : memref<7x32x1xf32, #tpu.memory_space<vmem>>, vector<1x32x1xf32>
    %12 = vector.shape_cast %11 : vector<1x32x1xf32> to vector<32x1xf32>
    %13 = vector.broadcast %12 : vector<32x1xf32> to vector<32x128xf32>
    %14 = arith.addf %10, %13 : vector<32x128xf32>
    %15 = math.tanh %14 : vector<32x128xf32>
    %c1_12 = arith.constant 1 : index
    %c0_13 = arith.constant 0 : index
    %c0_14 = arith.constant 0 : index
    %16 = vector.load %arg3[%c1_12, %c0_13, %c0_14] : memref<6x32x32xf32, #tpu.memory_space<vmem>>, vector<1x32x32xf32>
    %17 = vector.shape_cast %16 : vector<1x32x32xf32> to vector<32x32xf32>
    %cst_15 = arith.constant dense<0.000000e+00> : vector<32x128xf32>
    %18 = tpu.matmul %17, %15, %cst_15 {dimension_numbers = #tpu.dot_dimension_numbers<[1], [0], [0], [1], [0, 0, 1, 1], [], []>} : vector<32x32xf32>, vector<32x128xf32>, vector<32x128xf32> -> vector<32x128xf32>
    %c2 = arith.constant 2 : index
    %c0_16 = arith.constant 0 : index
    %c0_17 = arith.constant 0 : index
    %19 = vector.load %arg4[%c2, %c0_16, %c0_17] : memref<7x32x1xf32, #tpu.memory_space<vmem>>, vector<1x32x1xf32>
    %20 = vector.shape_cast %19 : vector<1x32x1xf32> to vector<32x1xf32>
    %21 = vector.broadcast %20 : vector<32x1xf32> to vector<32x128xf32>
    %22 = arith.addf %18, %21 : vector<32x128xf32>
    %23 = math.tanh %22 : vector<32x128xf32>
    %24 = arith.addf %7, %23 : vector<32x128xf32>
    %c2_18 = arith.constant 2 : index
    %c0_19 = arith.constant 0 : index
    %c0_20 = arith.constant 0 : index
    %25 = vector.load %arg3[%c2_18, %c0_19, %c0_20] : memref<6x32x32xf32, #tpu.memory_space<vmem>>, vector<1x32x32xf32>
    %26 = vector.shape_cast %25 : vector<1x32x32xf32> to vector<32x32xf32>
    %cst_21 = arith.constant dense<0.000000e+00> : vector<32x128xf32>
    %27 = tpu.matmul %26, %24, %cst_21 {dimension_numbers = #tpu.dot_dimension_numbers<[1], [0], [0], [1], [0, 0, 1, 1], [], []>} : vector<32x32xf32>, vector<32x128xf32>, vector<32x128xf32> -> vector<32x128xf32>
    %c3 = arith.constant 3 : index
    %c0_22 = arith.constant 0 : index
    %c0_23 = arith.constant 0 : index
    %28 = vector.load %arg4[%c3, %c0_22, %c0_23] : memref<7x32x1xf32, #tpu.memory_space<vmem>>, vector<1x32x1xf32>
    %29 = vector.shape_cast %28 : vector<1x32x1xf32> to vector<32x1xf32>
    %30 = vector.broadcast %29 : vector<32x1xf32> to vector<32x128xf32>
    %31 = arith.addf %27, %30 : vector<32x128xf32>
    %32 = math.tanh %31 : vector<32x128xf32>
    %c3_24 = arith.constant 3 : index
    %c0_25 = arith.constant 0 : index
    %c0_26 = arith.constant 0 : index
    %33 = vector.load %arg3[%c3_24, %c0_25, %c0_26] : memref<6x32x32xf32, #tpu.memory_space<vmem>>, vector<1x32x32xf32>
    %34 = vector.shape_cast %33 : vector<1x32x32xf32> to vector<32x32xf32>
    %cst_27 = arith.constant dense<0.000000e+00> : vector<32x128xf32>
    %35 = tpu.matmul %34, %32, %cst_27 {dimension_numbers = #tpu.dot_dimension_numbers<[1], [0], [0], [1], [0, 0, 1, 1], [], []>} : vector<32x32xf32>, vector<32x128xf32>, vector<32x128xf32> -> vector<32x128xf32>
    %c4 = arith.constant 4 : index
    %c0_28 = arith.constant 0 : index
    %c0_29 = arith.constant 0 : index
    %36 = vector.load %arg4[%c4, %c0_28, %c0_29] : memref<7x32x1xf32, #tpu.memory_space<vmem>>, vector<1x32x1xf32>
    %37 = vector.shape_cast %36 : vector<1x32x1xf32> to vector<32x1xf32>
    %38 = vector.broadcast %37 : vector<32x1xf32> to vector<32x128xf32>
    %39 = arith.addf %35, %38 : vector<32x128xf32>
    %40 = math.tanh %39 : vector<32x128xf32>
    %41 = arith.addf %24, %40 : vector<32x128xf32>
    %c4_30 = arith.constant 4 : index
    %c0_31 = arith.constant 0 : index
    %c0_32 = arith.constant 0 : index
    %42 = vector.load %arg3[%c4_30, %c0_31, %c0_32] : memref<6x32x32xf32, #tpu.memory_space<vmem>>, vector<1x32x32xf32>
    %43 = vector.shape_cast %42 : vector<1x32x32xf32> to vector<32x32xf32>
    %cst_33 = arith.constant dense<0.000000e+00> : vector<32x128xf32>
    %44 = tpu.matmul %43, %41, %cst_33 {dimension_numbers = #tpu.dot_dimension_numbers<[1], [0], [0], [1], [0, 0, 1, 1], [], []>} : vector<32x32xf32>, vector<32x128xf32>, vector<32x128xf32> -> vector<32x128xf32>
    %c5 = arith.constant 5 : index
    %c0_34 = arith.constant 0 : index
    %c0_35 = arith.constant 0 : index
    %45 = vector.load %arg4[%c5, %c0_34, %c0_35] : memref<7x32x1xf32, #tpu.memory_space<vmem>>, vector<1x32x1xf32>
    %46 = vector.shape_cast %45 : vector<1x32x1xf32> to vector<32x1xf32>
    %47 = vector.broadcast %46 : vector<32x1xf32> to vector<32x128xf32>
    %48 = arith.addf %44, %47 : vector<32x128xf32>
    %49 = math.tanh %48 : vector<32x128xf32>
    %c5_36 = arith.constant 5 : index
    %c0_37 = arith.constant 0 : index
    %c0_38 = arith.constant 0 : index
    %50 = vector.load %arg3[%c5_36, %c0_37, %c0_38] : memref<6x32x32xf32, #tpu.memory_space<vmem>>, vector<1x32x32xf32>
    %51 = vector.shape_cast %50 : vector<1x32x32xf32> to vector<32x32xf32>
    %cst_39 = arith.constant dense<0.000000e+00> : vector<32x128xf32>
    %52 = tpu.matmul %51, %49, %cst_39 {dimension_numbers = #tpu.dot_dimension_numbers<[1], [0], [0], [1], [0, 0, 1, 1], [], []>} : vector<32x32xf32>, vector<32x128xf32>, vector<32x128xf32> -> vector<32x128xf32>
    %c6 = arith.constant 6 : index
    %c0_40 = arith.constant 0 : index
    %c0_41 = arith.constant 0 : index
    %53 = vector.load %arg4[%c6, %c0_40, %c0_41] : memref<7x32x1xf32, #tpu.memory_space<vmem>>, vector<1x32x1xf32>
    %54 = vector.shape_cast %53 : vector<1x32x1xf32> to vector<32x1xf32>
    %55 = vector.broadcast %54 : vector<32x1xf32> to vector<32x128xf32>
    %56 = arith.addf %52, %55 : vector<32x128xf32>
    %57 = math.tanh %56 : vector<32x128xf32>
    %58 = arith.addf %41, %57 : vector<32x128xf32>
    %c0_42 = arith.constant 0 : index
    %c0_43 = arith.constant 0 : index
    %59 = vector.load %arg5[%c0_42, %c0_43] : memref<1x32xf32, #tpu.memory_space<vmem>>, vector<1x32xf32>
    %cst_44 = arith.constant dense<0.000000e+00> : vector<1x128xf32>
    %60 = tpu.matmul %59, %58, %cst_44 {dimension_numbers = #tpu.dot_dimension_numbers<[1], [0], [0], [1], [0, 0, 1, 1], [], []>} : vector<1x32xf32>, vector<32x128xf32>, vector<1x128xf32> -> vector<1x128xf32>
    %c0_45 = arith.constant 0 : index
    %c0_46 = arith.constant 0 : index
    %61 = vector.load %arg6[%c0_45, %c0_46] : memref<1x1xf32, #tpu.memory_space<vmem>>, vector<1x1xf32>
    %62 = vector.broadcast %61 : vector<1x1xf32> to vector<1x128xf32>
    %63 = arith.addf %60, %62 : vector<1x128xf32>
    %c0_47 = arith.constant 0 : index
    %c0_48 = arith.constant 0 : index
    %64 = vector.load %arg7[%c0_47, %c0_48] : memref<1x128xf32, #tpu.memory_space<vmem>>, vector<1x128xf32>
    tpu.vector_store %arg7[%c0_47, %c0_48], %63 {strides = array<i32>} : memref<1x128xf32, #tpu.memory_space<vmem>>, vector<1x128xf32>,
    return
  }
  func.func @transform_0(%arg0: i32) -> (i32, i32) {
    %c0_i32 = arith.constant 0 : i32
    %c0_i32_0 = arith.constant 0 : i32
    return %arg0, %c0_i32 : i32, i32
  }
  func.func @transform_1(%arg0: i32) -> (i32, i32) {
    %c0_i32 = arith.constant 0 : i32
    %c0_i32_0 = arith.constant 0 : i32
    %c0_i32_1 = arith.constant 0 : i32
    return %c0_i32, %c0_i32_0 : i32, i32
  }
  func.func @transform_2(%arg0: i32) -> (i32, i32, i32) {
    %c0_i32 = arith.constant 0 : i32
    %c0_i32_0 = arith.constant 0 : i32
    %c0_i32_1 = arith.constant 0 : i32
    %c0_i32_2 = arith.constant 0 : i32
    return %c0_i32, %c0_i32_0, %c0_i32_1 : i32, i32, i32
  }
  func.func @transform_3(%arg0: i32) -> (i32, i32, i32) {
    %c0_i32 = arith.constant 0 : i32
    %c0_i32_0 = arith.constant 0 : i32
    %c0_i32_1 = arith.constant 0 : i32
    %c0_i32_2 = arith.constant 0 : i32
    return %c0_i32, %c0_i32_0, %c0_i32_1 : i32, i32, i32
  }
  func.func @transform_4(%arg0: i32) -> (i32, i32) {
    %c0_i32 = arith.constant 0 : i32
    %c0_i32_0 = arith.constant 0 : i32
    %c0_i32_1 = arith.constant 0 : i32
    return %c0_i32, %c0_i32_0 : i32, i32
  }
  func.func @transform_5(%arg0: i32) -> (i32, i32) {
    %c0_i32 = arith.constant 0 : i32
    %c0_i32_0 = arith.constant 0 : i32
    %c0_i32_1 = arith.constant 0 : i32
    return %c0_i32, %c0_i32_0 : i32, i32
  }
  func.func @transform_6(%arg0: i32) -> (i32, i32) {
    %c0_i32 = arith.constant 0 : i32
    %c0_i32_0 = arith.constant 0 : i32
    return %c0_i32, %arg0 : i32, i32
  }
}

</mosaic_0001>

<llo_original>
// kernel: deep_ritz_forward.1
$region0: #{deep_ritz_forward.1}
  #allocation0 [shape = 'u32[]', space=smem, size = 0x4, offset = 0x4, fixed_abs, tag = 'smem constant byte address 0x4 - core index']
  #allocation1 [shape = 'u32[144,128]{1,0:T(1,128)}', space=vmem, size = 0x12000, scoped, tag = 'internal scratch']
  #allocation2 [shape = 'f32[1,1]{1,0:T(1,128)S(1)}', space=vmem, size = 0x200, scoped, tag = 'scoped memory for deep_ritz_forward.1']
  %s0 = inlined_call_operand.vmem [shape: f32[256,16], index: 0, kind: input, shape index: {}]
  %s1 = inlined_call_operand.vmem [shape: f32[32,16], index: 1, kind: input, shape index: {}]
  %s2 = inlined_call_operand.vmem [shape: f32[6,32,32], index: 2, kind: input, shape index: {}]
  %s3 = inlined_call_operand.vmem [shape: f32[7,32,1], index: 3, kind: input, shape index: {}]
  %s4 = inlined_call_operand.vmem [shape: f32[1,32], index: 4, kind: input, shape index: {}]
  %s5 = inlined_call_operand.<no memory space> [shape: f32[1,1], index: 5, kind: input, shape index: {}]
  %s6 = inlined_call_operand.hbm [shape: f32[1,256], index: 6, kind: output, shape index: {}]
  %s7 = sld [smem:[#allocation0]]
  $region57: #{deep_ritz_forward.1} parent=0
    _
  %s9 = ssub.s32 1, %s7
  %s10 = scalar_select 0, %s9, %s7
  %v11 = vstv %s5
  %12 = vst [vmem:[#allocation2] sm:$0x1] %v11
  $region1: #{deep_ritz_forward.1} parent=0
    #allocation3 [shape = 'u8[1024]{0}', space=vmem, size = 0x400, scoped, tag = 'output window, operand 0']
    #allocation4 [shape = 's32[2]{0}', space=sflag, size = 0x8, scoped, tag = 'scoped memory for deep_ritz_forward.1']
    %13 = vsyncpa [#allocation4], 0
    %s14 = scalar_lea.sflag [#allocation4], 1
    %15 = vsyncpa %s14, 0
    loop: start=0, step=1, limit=4
    $region2: #{deep_ritz_forward.1} parent=1 // loop_pre_header
      _
    $region3: #{deep_ritz_forward.1} parent=1 // loop_header
      %s17 = sphi 0, %s21
      %p18 = scmp.ge.s32.totalorder %s17, 4
      %s27 = sphi 0, %s29
      %s30 = sphi 0, %s27
      %s31 = sphi 0, %s30
      %s47 = sphi 0, %s31
      %s51 = sphi 0, %s51
      %s53 = sphi 0, %s51
      %s54 = sphi 0, %s53
      %s68 = sphi 0, %s54
      %s72 = sphi 0, %s72
      %s74 = sphi 0, %s72
      %s75 = sphi 0, %s74
      %s89 = sphi 0, %s75
      %s93 = sphi 0, %s93
      %s95 = sphi 0, %s93
      %s96 = sphi 0, %s95
      %s110 = sphi 0, %s96
      %s114 = sphi 0, %s114
      %s116 = sphi 0, %s114
      %s117 = sphi 0, %s116
      %s131 = sphi 0, %s117
      %s135 = sphi 0, %s135
      %s137 = sphi 0, %s135
      %s138 = sphi 0, %s137
      %s152 = sphi 0, %s138
      %s158 = sphi 0, %s160
      %s161 = sphi 0, %s158
      %s162 = sphi 0, %s161
      %s178 = sphi 0, %s162
    $region4: #{deep_ritz_forward.1} parent=1 // loop_header_branch
      %20 = sbr.rel (%p18) target = $region8
    $region5: #{deep_ritz_forward.1} parent=1 // loop_body
      %s22 = ssub.s32 %s17, 1
      %s23 = ssub.s32 %s17, 2
      %s24 = sadd.s32 %s17, 1
      %s25 = ssub.s32 %s17, %s24
      %p26 = scmp.eq.s32.totalorder %s25, 0
      %s28 = sadd.s32 %s27, 1
      %s29 = scalar_select %p26, %s27, %s28
      %p32 = pneg %p26
      %p33 = scmp.eq.s32.totalorder %s17, 1
      %p34 = por %p32, %p33
      %p35 = scmp.ne.s32.totalorder %s27, %s30
      %p36 = scmp.eq.s32.totalorder %s17, 0
      %p37 = por %p35, %p36
      %p38 = scmp.ne.s32.totalorder %s27, %s30
      %p39 = scmp.eq.s32.totalorder %s22, 1
      %p40 = por %p38, %p39
      %p41 = scmp.ne.s32.totalorder %s30, %s31
      %p42 = scmp.eq.s32.totalorder %s22, 0
      %p43 = por %p41, %p42
      %p44 = scmp.ne.s32.totalorder %s30, %s31
      %p45 = scmp.eq.s32.totalorder %s23, 1
      %p46 = por %p44, %p45
      %p48 = scmp.ne.s32.totalorder %s31, %s47
      %p49 = scmp.eq.s32.totalorder %s23, 0
      %p50 = por %p48, %p49
      %s52 = sadd.s32 %s51, 1
      %p55 = scmp.eq.s32.totalorder %s17, 1
      %p56 = scmp.ne.s32.totalorder %s51, %s53
      %p57 = scmp.eq.s32.totalorder %s17, 0
      %p58 = por %p56, %p57
      %p59 = scmp.ne.s32.totalorder %s51, %s53
      %p60 = scmp.eq.s32.totalorder %s22, 1
      %p61 = por %p59, %p60
      %p62 = scmp.ne.s32.totalorder %s53, %s54
      %p63 = scmp.eq.s32.totalorder %s22, 0
      %p64 = por %p62, %p63
      %p65 = scmp.ne.s32.totalorder %s53, %s54
      %p66 = scmp.eq.s32.totalorder %s23, 1
      %p67 = por %p65, %p66
      %p69 = scmp.ne.s32.totalorder %s54, %s68
      %p70 = scmp.eq.s32.totalorder %s23, 0
      %p71 = por %p69, %p70
      %s73 = sadd.s32 %s72, 1
      %p76 = scmp.eq.s32.totalorder %s17, 1
      %p77 = scmp.ne.s32.totalorder %s72, %s74
      %p78 = scmp.eq.s32.totalorder %s17, 0
      %p79 = por %p77, %p78
      %p80 = scmp.ne.s32.totalorder %s72, %s74
      %p81 = scmp.eq.s32.totalorder %s22, 1
      %p82 = por %p80, %p81
      %p83 = scmp.ne.s32.totalorder %s74, %s75
      %p84 = scmp.eq.s32.totalorder %s22, 0
      %p85 = por %p83, %p84
      %p86 = scmp.ne.s32.totalorder %s74, %s75
      %p87 = scmp.eq.s32.totalorder %s23, 1
      %p88 = por %p86, %p87
      %p90 = scmp.ne.s32.totalorder %s75, %s89
      %p91 = scmp.eq.s32.totalorder %s23, 0
      %p92 = por %p90, %p91
      %s94 = sadd.s32 %s93, 1
      %p97 = scmp.eq.s32.totalorder %s17, 1
      %p98 = scmp.ne.s32.totalorder %s93, %s95
      %p99 = scmp.eq.s32.totalorder %s17, 0
      %p100 = por %p98, %p99
      %p101 = scmp.ne.s32.totalorder %s93, %s95
      %p102 = scmp.eq.s32.totalorder %s22, 1
      %p103 = por %p101, %p102
      %p104 = scmp.ne.s32.totalorder %s95, %s96
      %p105 = scmp.eq.s32.totalorder %s22, 0
      %p106 = por %p104, %p105
      %p107 = scmp.ne.s32.totalorder %s95, %s96
      %p108 = scmp.eq.s32.totalorder %s23, 1
      %p109 = por %p107, %p108
      %p111 = scmp.ne.s32.totalorder %s96, %s110
      %p112 = scmp.eq.s32.totalorder %s23, 0
      %p113 = por %p111, %p112
      %s115 = sadd.s32 %s114, 1
      %p118 = scmp.eq.s32.totalorder %s17, 1
      %p119 = scmp.ne.s32.totalorder %s114, %s116
      %p120 = scmp.eq.s32.totalorder %s17, 0
      %p121 = por %p119, %p120
      %p122 = scmp.ne.s32.totalorder %s114, %s116
      %p123 = scmp.eq.s32.totalorder %s22, 1
      %p124 = por %p122, %p123
      %p125 = scmp.ne.s32.totalorder %s116, %s117
      %p126 = scmp.eq.s32.totalorder %s22, 0
      %p127 = por %p125, %p126
      %p128 = scmp.ne.s32.totalorder %s116, %s117
      %p129 = scmp.eq.s32.totalorder %s23, 1
      %p130 = por %p128, %p129
      %p132 = scmp.ne.s32.totalorder %s117, %s131
      %p133 = scmp.eq.s32.totalorder %s23, 0
      %p134 = por %p132, %p133
      %s136 = sadd.s32 %s135, 1
      %p139 = scmp.eq.s32.totalorder %s17, 1
      %p140 = scmp.ne.s32.totalorder %s135, %s137
      %p141 = scmp.eq.s32.totalorder %s17, 0
      %p142 = por %p140, %p141
      %p143 = scmp.ne.s32.totalorder %s135, %s137
      %p144 = scmp.eq.s32.totalorder %s22, 1
      %p145 = por %p143, %p144
      %p146 = scmp.ne.s32.totalorder %s137, %s138
      %p147 = scmp.eq.s32.totalorder %s22, 0
      %p148 = por %p146, %p147
      %p149 = scmp.ne.s32.totalorder %s137, %s138
      %p150 = scmp.eq.s32.totalorder %s23, 1
      %p151 = por %p149, %p150
      %p153 = scmp.ne.s32.totalorder %s138, %s152
      %p154 = scmp.eq.s32.totalorder %s23, 0
      %p155 = por %p153, %p154
      %s156 = ssub.s32 %s17, %s24
      %p157 = scmp.eq.s32.totalorder %s156, 0
      %s159 = sadd.s32 %s158, 1
      %s160 = scalar_select %p157, %s158, %s159
      %p163 = pneg %p157
      %p164 = scmp.eq.s32.totalorder %s17, 1
      %p165 = por %p163, %p164
      %p166 = scmp.ne.s32.totalorder %s158, %s161
      %p167 = scmp.eq.s32.totalorder %s17, 0
      %p168 = por %p166, %p167
      %p169 = scmp.ne.s32.totalorder %s158, %s161
      %p170 = scmp.eq.s32.totalorder %s22, 1
      %p171 = por %p169, %p170
      %p172 = scmp.ne.s32.totalorder %s161, %s162
      %p173 = scmp.eq.s32.totalorder %s22, 0
      %p174 = por %p172, %p173
      %p175 = scmp.ne.s32.totalorder %s161, %s162
      %p176 = scmp.eq.s32.totalorder %s23, 1
      %p177 = por %p175, %p176
      %p179 = scmp.ne.s32.totalorder %s162, %s178
      %p180 = scmp.eq.s32.totalorder %s23, 0
      %p181 = por %p179, %p180
      %p182 = scmp.le.s32.totalorder 1, %s17
      %p183 = scmp.lt.s32.totalorder %s17, 3
      %p184 = pnand %p182, %p183
      %p185 = pneg %p184
      // Predicated region
      $region9: #{deep_ritz_forward.1} parent=5 // pred_check
        _
      $region10: #{deep_ritz_forward.1} parent=5 // pred_check_branch
        %187 = sbr.rel (%p184) target = $region12
      $region11: #{deep_ritz_forward.1} parent=5 // pred_region
        %s188 = ssub.s32 %s17, 1
        // Predicated region
        $region13: #{deep_ritz_forward.1} parent=11 // pred_check
          %p189 = pneg %p64
        $region14: #{deep_ritz_forward.1} parent=11 // pred_check_branch
          %191 = sbr.rel (%p189) target = $region16
        $region15: #{deep_ritz_forward.1} parent=11 // pred_region
          _
        $region16: #{deep_ritz_forward.1} parent=11 // pred_fallthru
          _
        // Predicated region
        $region17: #{deep_ritz_forward.1} parent=11 // pred_check
          %p192 = pneg %p85
        $region18: #{deep_ritz_forward.1} parent=11 // pred_check_branch
          %194 = sbr.rel (%p192) target = $region20
        $region19: #{deep_ritz_forward.1} parent=11 // pred_region
          _
        $region20: #{deep_ritz_forward.1} parent=11 // pred_fallthru
          _
        // Predicated region
        $region21: #{deep_ritz_forward.1} parent=11 // pred_check
          %p195 = pneg %p106
        $region22: #{deep_ritz_forward.1} parent=11 // pred_check_branch
          %197 = sbr.rel (%p195) target = $region24
        $region23: #{deep_ritz_forward.1} parent=11 // pred_region
          _
        $region24: #{deep_ritz_forward.1} parent=11 // pred_fallthru
          _
        // Predicated region
        $region25: #{deep_ritz_forward.1} parent=11 // pred_check
          %p198 = pneg %p127
        $region26: #{deep_ritz_forward.1} parent=11 // pred_check_branch
          %200 = sbr.rel (%p198) target = $region28
        $region27: #{deep_ritz_forward.1} parent=11 // pred_region
          _
        $region28: #{deep_ritz_forward.1} parent=11 // pred_fallthru
          _
        // Predicated region
        $region29: #{deep_ritz_forward.1} parent=11 // pred_check
          %p201 = pneg %p148
        $region30: #{deep_ritz_forward.1} parent=11 // pred_check_branch
          %203 = sbr.rel (%p201) target = $region32
        $region31: #{deep_ritz_forward.1} parent=11 // pred_region
          _
        $region32: #{deep_ritz_forward.1} parent=11 // pred_fallthru
          _
      $region12: #{deep_ritz_forward.1} parent=5 // pred_fallthru
        _
      %p204 = scmp.lt.s32.totalorder %s17, 2
      // Predicated region
      $region33: #{deep_ritz_forward.1} parent=5 // pred_check
        %p205 = pneg %p204
      $region34: #{deep_ritz_forward.1} parent=5 // pred_check_branch
        %207 = sbr.rel (%p205) target = $region36
      $region35: #{deep_ritz_forward.1} parent=5 // pred_region
        // Predicated region
        $region37: #{deep_ritz_forward.1} parent=35 // pred_check
          %p208 = pneg %p37
        $region38: #{deep_ritz_forward.1} parent=35 // pred_check_branch
          %210 = sbr.rel (%p208) target = $region40
        $region39: #{deep_ritz_forward.1} parent=35 // pred_region
          %s211 = smul.u32 16, %s17
          %p212 = scmp.lt.s32.totalorder %s211, 31
          %s213 = scalar_select %p212, %s211, 31
          %s214 = smul.addr %s213, 8
          %s215 = scalar_lea.vmem %s0, %s214
          %s216 = smul.u32 16, %s17
        $region40: #{deep_ritz_forward.1} parent=35 // pred_fallthru
          _
      $region36: #{deep_ritz_forward.1} parent=5 // pred_fallthru
        _
      %p217 = scmp.le.s32.totalorder 1, %s17
      %p218 = scmp.lt.s32.totalorder %s17, 3
      %p219 = pnand %p217, %p218
      %p220 = pneg %p219
      // Predicated region
      $region41: #{deep_ritz_forward.1} parent=5 // pred_check
        _
      $region42: #{deep_ritz_forward.1} parent=5 // pred_check_branch
        %222 = sbr.rel (%p219) target = $region44
      $region43: #{deep_ritz_forward.1} parent=5 // pred_region
        %s223 = ssub.s32 %s17, 1
        %s224 = smul.u32 16, %s22
        %p225 = scmp.lt.s32.totalorder %s224, 31
        %s226 = scalar_select %p225, %s224, 31
        %s227 = smul.addr %s226, 8
        %s228 = scalar_lea.vmem %s0, %s227
        %p229 = pneg %p43
        %p230 = pneg %p40
        %p231 = pneg %p64
        %p232 = pneg %p61
        %p233 = pneg %p85
        %p234 = pneg %p82
        %p235 = pneg %p106
        %p236 = pneg %p103
        %p237 = pneg %p127
        %p238 = pneg %p124
        %p239 = pneg %p148
        %p240 = pneg %p145
        %p241 = pneg %p174
        %p242 = pneg %p171
        %s243 = sand.u32 %s161, 1
        %s244 = scalar_lea.sflag [#allocation4], %s243
        %s245 = sand.u32 %s161, 1
        %s246 = scalar_lea.vmem [#allocation3], %s245
        %s247 = smul.u32 16, %s22
        %p248 = scmp.lt.s32.totalorder %s247, 31
        %s249 = scalar_select %p248, %s247, 31
        %s250 = smul.addr %s249, 8
        %s251 = scalar_lea.vmem %s0, %s250
        %s252 = smul.u32 16, %s22
        %v253 = vld [vmem:[%s1] sm:$0xff]
        %v254 = vld [vmem:[%s1 + $0x8] sm:$0xff]
        %v255 = vld [vmem:[%s1 + $0x10] sm:$0xff]
        %v256 = vld [vmem:[%s1 + $0x18] sm:$0xff]
        %v257 = vld [vmem:[%s251] sm:$0xff]
        %v258 = vld [vmem:[%s251 + $0x8] sm:$0xff]
        %v259 = vld [vmem:[%s251 + $0x10] sm:$0xff]
        %v260 = vld [vmem:[%s251 + $0x18] sm:$0xff]
        %v261 = vld [vmem:[%s251 + $0x20] sm:$0xff]
        %v262 = vld [vmem:[%s251 + $0x28] sm:$0xff]
        %v263 = vld [vmem:[%s251 + $0x30] sm:$0xff]
        %v264 = vld [vmem:[%s251 + $0x38] sm:$0xff]
        %v265 = vld [vmem:[%s251 + $0x40] sm:$0xff]
        %v266 = vld [vmem:[%s251 + $0x48] sm:$0xff]
        %v267 = vld [vmem:[%s251 + $0x50] sm:$0xff]
        %v268 = vld [vmem:[%s251 + $0x58] sm:$0xff]
        %v269 = vld [vmem:[%s251 + $0x60] sm:$0xff]
        %v270 = vld [vmem:[%s251 + $0x68] sm:$0xff]
        %v271 = vld [vmem:[%s251 + $0x70] sm:$0xff]
        %v272 = vld [vmem:[%s251 + $0x78] sm:$0xff]
        %v273 = vld [vmem:[%s3] sm:$0xff]
        %v274 = vld [vmem:[%s3 + $0x8] sm:$0xff]
        %v275 = vld [vmem:[%s3 + $0x10] sm:$0xff]
        %v276 = vld [vmem:[%s3 + $0x18] sm:$0xff]
        %278 = vset.pattern.permute.xlu0 0
        %279 = vperm.xlu0 %278, %v273
        %v280 = vpop.permute.xlu0 %279
        %283 = vset.pattern.permute.xlu0 0
        %284 = vperm.xlu0 %283, %v274
        %v285 = vpop.permute.xlu0 %284
        %288 = vset.pattern.permute.xlu0 0
        %289 = vperm.xlu0 %288, %v275
        %v290 = vpop.permute.xlu0 %289
        %293 = vset.pattern.permute.xlu0 0
        %294 = vperm.xlu0 %293, %v276
        %v295 = vpop.permute.xlu0 %294
        %vm297 = vcmask 130048
        %v299 = vsel %vm297, %v253, 0
        %v302 = vsel %vm297, %v254, 0
        %v305 = vsel %vm297, %v255, 0
        %v308 = vsel %vm297, %v256, 0
        %v311 = vsel %vm297, %v257, 0
        %v314 = vsel %vm297, %v258, 0
        %v317 = vsel %vm297, %v259, 0
        %v320 = vsel %vm297, %v260, 0
        %v323 = vsel %vm297, %v261, 0
        %v326 = vsel %vm297, %v262, 0
        %v329 = vsel %vm297, %v263, 0
        %v332 = vsel %vm297, %v264, 0
        %v335 = vsel %vm297, %v265, 0
        %v338 = vsel %vm297, %v266, 0
        %v341 = vsel %vm297, %v267, 0
        %v344 = vsel %vm297, %v268, 0
        %v347 = vsel %vm297, %v269, 0
        %v350 = vsel %vm297, %v270, 0
        %v353 = vsel %vm297, %v271, 0
        %v356 = vsel %vm297, %v272, 0
        %358 = vmatprep.subr.mxu0 0.0
        %359 = vmatpush1.xpose.msra.mxu0 %v311
        %360 = vmatprep.subr.mxu0 0.0
        %361 = vmatpush1.xpose.msra.mxu0 %v314
        %362 = vmatprep.subr.mxu0 0.0
        %363 = vmatpush1.xpose.msra.mxu0 %v317
        %364 = vmatprep.subr.mxu0 0.0
        %365 = vmatpush1.xpose.msra.mxu0 %v320
        %366 = vmatprep.subr.mxu0 0.0
        %367 = vmatpush1.xpose.msra.mxu0 %v323
        %368 = vmatprep.subr.mxu0 0.0
        %369 = vmatpush1.xpose.msra.mxu0 %v326
        %370 = vmatprep.subr.mxu0 0.0
        %371 = vmatpush1.xpose.msra.mxu0 %v329
        %372 = vmatprep.subr.mxu0 0.0
        %373 = vmatpush1.xpose.msra.mxu0 %v332
        %374 = vmatprep.subr.mxu0 0.0
        %375 = vmatpush1.xpose.msra.mxu0 %v335
        %376 = vmatprep.subr.mxu0 0.0
        %377 = vmatpush1.xpose.msra.mxu0 %v338
        %378 = vmatprep.subr.mxu0 0.0
        %379 = vmatpush1.xpose.msra.mxu0 %v341
        %380 = vmatprep.subr.mxu0 0.0
        %381 = vmatpush1.xpose.msra.mxu0 %v344
        %382 = vmatprep.subr.mxu0 0.0
        %383 = vmatpush1.xpose.msra.mxu0 %v347
        %384 = vmatprep.subr.mxu0 0.0
        %385 = vmatpush1.xpose.msra.mxu0 %v350
        %386 = vmatprep.subr.mxu0 0.0
        %387 = vmatpush1.xpose.msra.mxu0 %v353
        %388 = vmatprep.subr.mxu0 0.0
        %389 = vmatpush1.xpose.msra.mxu0 %v356
        %390 = vmatprep.subr.mxu0 0.0
        %391 = vmatpush1.xpose.msra.mxu0 0.0
        %392 = vmatprep.subr.mxu0 0.0
        %393 = vmatpush1.xpose.msra.mxu0 0.0
        %394 = vmatprep.subr.mxu0 0.0
        %395 = vmatpush1.xpose.msra.mxu0 0.0
        %396 = vmatprep.subr.mxu0 0.0
        %397 = vmatpush1.xpose.msra.mxu0 0.0
        %398 = vmatprep.subr.mxu0 0.0
        %399 = vmatpush1.xpose.msra.mxu0 0.0
        %400 = vmatprep.subr.mxu0 0.0
        %401 = vmatpush1.xpose.msra.mxu0 0.0
        %402 = vmatprep.subr.mxu0 0.0
        %403 = vmatpush1.xpose.msra.mxu0 0.0
        %404 = vmatprep.subr.mxu0 0.0
        %405 = vmatpush1.xpose.msra.mxu0 0.0
        %406 = vmatprep.subr.mxu0 0.0
        %407 = vmatpush1.xpose.msra.mxu0 0.0
        %408 = vmatprep.subr.mxu0 0.0
        %409 = vmatpush1.xpose.msra.mxu0 0.0
        %410 = vmatprep.subr.mxu0 0.0
        %411 = vmatpush1.xpose.msra.mxu0 0.0
        %412 = vmatprep.subr.mxu0 0.0
        %413 = vmatpush1.xpose.msra.mxu0 0.0
        %414 = vmatprep.subr.mxu0 0.0
        %415 = vmatpush1.xpose.msra.mxu0 0.0
        %416 = vmatprep.subr.mxu0 0.0
        %417 = vmatpush1.xpose.msra.mxu0 0.0
        %418 = vmatprep.subr.mxu0 0.0
        %419 = vmatpush1.xpose.msra.mxu0 0.0
        %420 = vmatprep.subr.mxu0 0.0
        %421 = vmatpush1.xpose.msra.mxu0 0.0
        %422 = vmatprep.mubr.f32.mxu0 0.0
        %423 = vmatmul.mubr.f32.gmra.mrb[0].mxu0 %v299
        %v424 = vpop.f32.mrb[0].mxu0
        %v425 = vadd.f32 %v280, %v424
        %v426 = vpop.f32.mrb[0].mxu0
        %427 = vmatprep.mubr.f32.mxu0 0.0
        %428 = vmatmul.mubr.f32.gmra.mrb[0].mxu0 %v302
        %v429 = vpop.f32.mrb[0].mxu0
        %v430 = vadd.f32 %v285, %v429
        %v431 = vpop.f32.mrb[0].mxu0
        %432 = vmatprep.mubr.f32.mxu0 0.0
        %433 = vmatmul.mubr.f32.gmra.mrb[0].mxu0 %v305
        %v434 = vpop.f32.mrb[0].mxu0
        %v435 = vadd.f32 %v290, %v434
        %v436 = vpop.f32.mrb[0].mxu0
        %437 = vmatprep.mubr.f32.mxu0 0.0
        %438 = vmatmul.mubr.f32.gmra.mrb[0].mxu0 %v308
        %v439 = vpop.f32.mrb[0].mxu0
        %v440 = vadd.f32 %v295, %v439
        %v441 = vpop.f32.mrb[0].mxu0
        %442 = vdwg.mxu0
        %v443 = vtanh.pop %v425
        %v444 = vtanh.pop %v430
        %v445 = vtanh.pop %v435
        %v446 = vtanh.pop %v440
        %v447 = vld [vmem:[%s2] sm:$0xff]
        %v448 = vld [vmem:[%s2 + $0x8] sm:$0xff]
        %v449 = vld [vmem:[%s2 + $0x10] sm:$0xff]
        %v450 = vld [vmem:[%s2 + $0x18] sm:$0xff]
        %s451 = scalar_lea.vmem %s3, 32
        %v452 = vld [vmem:[%s451] sm:$0xff]
        %v453 = vld [vmem:[%s451 + $0x8] sm:$0xff]
        %v454 = vld [vmem:[%s451 + $0x10] sm:$0xff]
        %v455 = vld [vmem:[%s451 + $0x18] sm:$0xff]
        %457 = vset.pattern.permute.xlu0 0
        %458 = vperm.xlu0 %457, %v452
        %v459 = vpop.permute.xlu0 %458
        %462 = vset.pattern.permute.xlu0 0
        %463 = vperm.xlu0 %462, %v453
        %v464 = vpop.permute.xlu0 %463
        %467 = vset.pattern.permute.xlu0 0
        %468 = vperm.xlu0 %467, %v454
        %v469 = vpop.permute.xlu0 %468
        %472 = vset.pattern.permute.xlu0 0
        %473 = vperm.xlu0 %472, %v455
        %v474 = vpop.permute.xlu0 %473
        %vm476 = vcmask 261120
        %v478 = vsel %vm476, %v447, 0
        %v481 = vsel %vm476, %v448, 0
        %v484 = vsel %vm476, %v449, 0
        %v487 = vsel %vm476, %v450, 0
        %489 = vmatprep.subr.mxu0 0.0
        %490 = vmatpush1.msra.mxu0 %v443
        %491 = vmatprep.subr.mxu0 0.0
        %492 = vmatpush1.msra.mxu0 %v444
        %493 = vmatprep.subr.mxu0 0.0
        %494 = vmatpush1.msra.mxu0 %v445
        %495 = vmatprep.subr.mxu0 0.0
        %496 = vmatpush1.msra.mxu0 %v446
        %497 = vmatprep.subr.mxu0 0.0
        %498 = vmatpush1.msra.mxu0 0.0
        %499 = vmatprep.subr.mxu0 0.0
        %500 = vmatpush1.msra.mxu0 0.0
        %501 = vmatprep.subr.mxu0 0.0
        %502 = vmatpush1.msra.mxu0 0.0
        %503 = vmatprep.subr.mxu0 0.0
        %504 = vmatpush1.msra.mxu0 0.0
        %505 = vmatprep.subr.mxu0 0.0
        %506 = vmatpush1.msra.mxu0 0.0
        %507 = vmatprep.subr.mxu0 0.0
        %508 = vmatpush1.msra.mxu0 0.0
        %509 = vmatprep.subr.mxu0 0.0
        %510 = vmatpush1.msra.mxu0 0.0
        %511 = vmatprep.subr.mxu0 0.0
        %512 = vmatpush1.msra.mxu0 0.0
        %513 = vmatprep.subr.mxu0 0.0
        %514 = vmatpush1.msra.mxu0 0.0
        %515 = vmatprep.subr.mxu0 0.0
        %516 = vmatpush1.msra.mxu0 0.0
        %517 = vmatprep.subr.mxu0 0.0
        %518 = vmatpush1.msra.mxu0 0.0
        %519 = vmatprep.subr.mxu0 0.0
        %520 = vmatpush1.msra.mxu0 0.0
        %521 = vmatprep.subr.mxu0 0.0
        %522 = vmatpush1.msra.mxu0 0.0
        %523 = vmatprep.subr.mxu0 0.0
        %524 = vmatpush1.msra.mxu0 0.0
        %525 = vmatprep.subr.mxu0 0.0
        %526 = vmatpush1.msra.mxu0 0.0
        %527 = vmatprep.subr.mxu0 0.0
        %528 = vmatpush1.msra.mxu0 0.0
        %529 = vmatprep.subr.mxu0 0.0
        %530 = vmatpush1.msra.mxu0 0.0
        %531 = vmatprep.subr.mxu0 0.0
        %532 = vmatpush1.msra.mxu0 0.0
        %533 = vmatprep.subr.mxu0 0.0
        %534 = vmatpush1.msra.mxu0 0.0
        %535 = vmatprep.subr.mxu0 0.0
        %536 = vmatpush1.msra.mxu0 0.0
        %537 = vmatprep.subr.mxu0 0.0
        %538 = vmatpush1.msra.mxu0 0.0
        %539 = vmatprep.subr.mxu0 0.0
        %540 = vmatpush1.msra.mxu0 0.0
        %541 = vmatprep.subr.mxu0 0.0
        %542 = vmatpush1.msra.mxu0 0.0
        %543 = vmatprep.subr.mxu0 0.0
        %544 = vmatpush1.msra.mxu0 0.0
        %545 = vmatprep.subr.mxu0 0.0
        %546 = vmatpush1.msra.mxu0 0.0
        %547 = vmatprep.subr.mxu0 0.0
        %548 = vmatpush1.msra.mxu0 0.0
        %549 = vmatprep.subr.mxu0 0.0
        %550 = vmatpush1.msra.mxu0 0.0
        %551 = vmatprep.subr.mxu0 0.0
        %552 = vmatpush1.msra.mxu0 0.0
        %553 = vmatprep.mubr.f32.mxu0 0.0
        %554 = vmatmul.mubr.f32.gmra.mrb[0].mxu0 %v478
        %v555 = vpop.f32.mrb[0].mxu0
        %v556 = vadd.f32 %v459, %v555
        %v557 = vpop.f32.mrb[0].mxu0
        %558 = vmatprep.mubr.f32.mxu0 0.0
        %559 = vmatmul.mubr.f32.gmra.mrb[0].mxu0 %v481
        %v560 = vpop.f32.mrb[0].mxu0
        %v561 = vadd.f32 %v464, %v560
        %v562 = vpop.f32.mrb[0].mxu0
        %563 = vmatprep.mubr.f32.mxu0 0.0
        %564 = vmatmul.mubr.f32.gmra.mrb[0].mxu0 %v484
        %v565 = vpop.f32.mrb[0].mxu0
        %v566 = vadd.f32 %v469, %v565
        %v567 = vpop.f32.mrb[0].mxu0
        %568 = vmatprep.mubr.f32.mxu0 0.0
        %569 = vmatmul.mubr.f32.gmra.mrb[0].mxu0 %v487
        %v570 = vpop.f32.mrb[0].mxu0
        %v571 = vadd.f32 %v474, %v570
        %v572 = vpop.f32.mrb[0].mxu0
        %573 = vdwg.mxu0
        %v574 = vtanh.pop %v556
        %v575 = vtanh.pop %v561
        %v576 = vtanh.pop %v566
        %v577 = vtanh.pop %v571
        %s578 = scalar_lea.vmem %s2, 32
        %v579 = vld [vmem:[%s578] sm:$0xff]
        %v580 = vld [vmem:[%s578 + $0x8] sm:$0xff]
        %v581 = vld [vmem:[%s578 + $0x10] sm:$0xff]
        %v582 = vld [vmem:[%s578 + $0x18] sm:$0xff]
        %s583 = scalar_lea.vmem %s3, 64
        %v584 = vld [vmem:[%s583] sm:$0xff]
        %v585 = vld [vmem:[%s583 + $0x8] sm:$0xff]
        %v586 = vld [vmem:[%s583 + $0x10] sm:$0xff]
        %v587 = vld [vmem:[%s583 + $0x18] sm:$0xff]
        %589 = vset.pattern.permute.xlu0 0
        %590 = vperm.xlu0 %589, %v584
        %v591 = vpop.permute.xlu0 %590
        %594 = vset.pattern.permute.xlu0 0
        %595 = vperm.xlu0 %594, %v585
        %v596 = vpop.permute.xlu0 %595
        %599 = vset.pattern.permute.xlu0 0
        %600 = vperm.xlu0 %599, %v586
        %v601 = vpop.permute.xlu0 %600
        %604 = vset.pattern.permute.xlu0 0
        %605 = vperm.xlu0 %604, %v587
        %v606 = vpop.permute.xlu0 %605
        %v609 = vsel %vm476, %v579, 0
        %v612 = vsel %vm476, %v580, 0
        %v615 = vsel %vm476, %v581, 0
        %v618 = vsel %vm476, %v582, 0
        %620 = vmatprep.subr.mxu0 0.0
        %621 = vmatpush1.msra.mxu0 %v574
        %622 = vmatprep.subr.mxu0 0.0
        %623 = vmatpush1.msra.mxu0 %v575
        %624 = vmatprep.subr.mxu0 0.0
        %625 = vmatpush1.msra.mxu0 %v576
        %626 = vmatprep.subr.mxu0 0.0
        %627 = vmatpush1.msra.mxu0 %v577
        %628 = vmatprep.subr.mxu0 0.0
        %629 = vmatpush1.msra.mxu0 0.0
        %630 = vmatprep.subr.mxu0 0.0
        %631 = vmatpush1.msra.mxu0 0.0
        %632 = vmatprep.subr.mxu0 0.0
        %633 = vmatpush1.msra.mxu0 0.0
        %634 = vmatprep.subr.mxu0 0.0
        %635 = vmatpush1.msra.mxu0 0.0
        %636 = vmatprep.subr.mxu0 0.0
        %637 = vmatpush1.msra.mxu0 0.0
        %638 = vmatprep.subr.mxu0 0.0
        %639 = vmatpush1.msra.mxu0 0.0
        %640 = vmatprep.subr.mxu0 0.0
        %641 = vmatpush1.msra.mxu0 0.0
        %642 = vmatprep.subr.mxu0 0.0
        %643 = vmatpush1.msra.mxu0 0.0
        %644 = vmatprep.subr.mxu0 0.0
        %645 = vmatpush1.msra.mxu0 0.0
        %646 = vmatprep.subr.mxu0 0.0
        %647 = vmatpush1.msra.mxu0 0.0
        %648 = vmatprep.subr.mxu0 0.0
        %649 = vmatpush1.msra.mxu0 0.0
        %650 = vmatprep.subr.mxu0 0.0
        %651 = vmatpush1.msra.mxu0 0.0
        %652 = vmatprep.subr.mxu0 0.0
        %653 = vmatpush1.msra.mxu0 0.0
        %654 = vmatprep.subr.mxu0 0.0
        %655 = vmatpush1.msra.mxu0 0.0
        %656 = vmatprep.subr.mxu0 0.0
        %657 = vmatpush1.msra.mxu0 0.0
        %658 = vmatprep.subr.mxu0 0.0
        %659 = vmatpush1.msra.mxu0 0.0
        %660 = vmatprep.subr.mxu0 0.0
        %661 = vmatpush1.msra.mxu0 0.0
        %662 = vmatprep.subr.mxu0 0.0
        %663 = vmatpush1.msra.mxu0 0.0
        %664 = vmatprep.subr.mxu0 0.0
        %665 = vmatpush1.msra.mxu0 0.0
        %666 = vmatprep.subr.mxu0 0.0
        %667 = vmatpush1.msra.mxu0 0.0
        %668 = vmatprep.subr.mxu0 0.0
        %669 = vmatpush1.msra.mxu0 0.0
        %670 = vmatprep.subr.mxu0 0.0
        %671 = vmatpush1.msra.mxu0 0.0
        %672 = vmatprep.subr.mxu0 0.0
        %673 = vmatpush1.msra.mxu0 0.0
        %674 = vmatprep.subr.mxu0 0.0
        %675 = vmatpush1.msra.mxu0 0.0
        %676 = vmatprep.subr.mxu0 0.0
        %677 = vmatpush1.msra.mxu0 0.0
        %678 = vmatprep.subr.mxu0 0.0
        %679 = vmatpush1.msra.mxu0 0.0
        %680 = vmatprep.subr.mxu0 0.0
        %681 = vmatpush1.msra.mxu0 0.0
        %682 = vmatprep.subr.mxu0 0.0
        %683 = vmatpush1.msra.mxu0 0.0
        %684 = vmatprep.mubr.f32.mxu0 0.0
        %685 = vmatmul.mubr.f32.gmra.mrb[0].mxu0 %v609
        %v686 = vpop.f32.mrb[0].mxu0
        %v687 = vadd.f32 %v591, %v686
        %v688 = vpop.f32.mrb[0].mxu0
        %689 = vmatprep.mubr.f32.mxu0 0.0
        %690 = vmatmul.mubr.f32.gmra.mrb[0].mxu0 %v612
        %v691 = vpop.f32.mrb[0].mxu0
        %v692 = vadd.f32 %v596, %v691
        %v693 = vpop.f32.mrb[0].mxu0
        %694 = vmatprep.mubr.f32.mxu0 0.0
        %695 = vmatmul.mubr.f32.gmra.mrb[0].mxu0 %v615
        %v696 = vpop.f32.mrb[0].mxu0
        %v697 = vadd.f32 %v601, %v696
        %v698 = vpop.f32.mrb[0].mxu0
        %699 = vmatprep.mubr.f32.mxu0 0.0
        %700 = vmatmul.mubr.f32.gmra.mrb[0].mxu0 %v618
        %v701 = vpop.f32.mrb[0].mxu0
        %v702 = vadd.f32 %v606, %v701
        %v703 = vpop.f32.mrb[0].mxu0
        %704 = vdwg.mxu0
        %v705 = vtanh.pop %v687
        %v706 = vtanh.pop %v692
        %v707 = vtanh.pop %v697
        %v708 = vtanh.pop %v702
        %v709 = vadd.f32 %v443, %v705
        %v710 = vadd.f32 %v444, %v706
        %v711 = vadd.f32 %v445, %v707
        %v712 = vadd.f32 %v446, %v708
        %s713 = scalar_lea.vmem %s2, 64
        %v714 = vld [vmem:[%s713] sm:$0xff]
        %v715 = vld [vmem:[%s713 + $0x8] sm:$0xff]
        %v716 = vld [vmem:[%s713 + $0x10] sm:$0xff]
        %v717 = vld [vmem:[%s713 + $0x18] sm:$0xff]
        %s718 = scalar_lea.vmem %s3, 96
        %v719 = vld [vmem:[%s718] sm:$0xff]
        %v720 = vld [vmem:[%s718 + $0x8] sm:$0xff]
        %v721 = vld [vmem:[%s718 + $0x10] sm:$0xff]
        %v722 = vld [vmem:[%s718 + $0x18] sm:$0xff]
        %724 = vset.pattern.permute.xlu0 0
        %725 = vperm.xlu0 %724, %v719
        %v726 = vpop.permute.xlu0 %725
        %729 = vset.pattern.permute.xlu0 0
        %730 = vperm.xlu0 %729, %v720
        %v731 = vpop.permute.xlu0 %730
        %734 = vset.pattern.permute.xlu0 0
        %735 = vperm.xlu0 %734, %v721
        %v736 = vpop.permute.xlu0 %735
        %739 = vset.pattern.permute.xlu0 0
        %740 = vperm.xlu0 %739, %v722
        %v741 = vpop.permute.xlu0 %740
        %v744 = vsel %vm476, %v714, 0
        %v747 = vsel %vm476, %v715, 0
        %v750 = vsel %vm476, %v716, 0
        %v753 = vsel %vm476, %v717, 0
        %755 = vmatprep.subr.mxu0 0.0
        %756 = vmatpush1.msra.mxu0 %v709
        %757 = vmatprep.subr.mxu0 0.0
        %758 = vmatpush1.msra.mxu0 %v710
        %759 = vmatprep.subr.mxu0 0.0
        %760 = vmatpush1.msra.mxu0 %v711
        %761 = vmatprep.subr.mxu0 0.0
        %762 = vmatpush1.msra.mxu0 %v712
        %763 = vmatprep.subr.mxu0 0.0
        %764 = vmatpush1.msra.mxu0 0.0
        %765 = vmatprep.subr.mxu0 0.0
        %766 = vmatpush1.msra.mxu0 0.0
        %767 = vmatprep.subr.mxu0 0.0
        %768 = vmatpush1.msra.mxu0 0.0
        %769 = vmatprep.subr.mxu0 0.0
        %770 = vmatpush1.msra.mxu0 0.0
        %771 = vmatprep.subr.mxu0 0.0
        %772 = vmatpush1.msra.mxu0 0.0
        %773 = vmatprep.subr.mxu0 0.0
        %774 = vmatpush1.msra.mxu0 0.0
        %775 = vmatprep.subr.mxu0 0.0
        %776 = vmatpush1.msra.mxu0 0.0
        %777 = vmatprep.subr.mxu0 0.0
        %778 = vmatpush1.msra.mxu0 0.0
        %779 = vmatprep.subr.mxu0 0.0
        %780 = vmatpush1.msra.mxu0 0.0
        %781 = vmatprep.subr.mxu0 0.0
        %782 = vmatpush1.msra.mxu0 0.0
        %783 = vmatprep.subr.mxu0 0.0
        %784 = vmatpush1.msra.mxu0 0.0
        %785 = vmatprep.subr.mxu0 0.0
        %786 = vmatpush1.msra.mxu0 0.0
        %787 = vmatprep.subr.mxu0 0.0
        %788 = vmatpush1.msra.mxu0 0.0
        %789 = vmatprep.subr.mxu0 0.0
        %790 = vmatpush1.msra.mxu0 0.0
        %791 = vmatprep.subr.mxu0 0.0
        %792 = vmatpush1.msra.mxu0 0.0
        %793 = vmatprep.subr.mxu0 0.0
        %794 = vmatpush1.msra.mxu0 0.0
        %795 = vmatprep.subr.mxu0 0.0
        %796 = vmatpush1.msra.mxu0 0.0
        %797 = vmatprep.subr.mxu0 0.0
        %798 = vmatpush1.msra.mxu0 0.0
        %799 = vmatprep.subr.mxu0 0.0
        %800 = vmatpush1.msra.mxu0 0.0
        %801 = vmatprep.subr.mxu0 0.0
        %802 = vmatpush1.msra.mxu0 0.0
        %803 = vmatprep.subr.mxu0 0.0
        %804 = vmatpush1.msra.mxu0 0.0
        %805 = vmatprep.subr.mxu0 0.0
        %806 = vmatpush1.msra.mxu0 0.0
        %807 = vmatprep.subr.mxu0 0.0
        %808 = vmatpush1.msra.mxu0 0.0
        %809 = vmatprep.subr.mxu0 0.0
        %810 = vmatpush1.msra.mxu0 0.0
        %811 = vmatprep.subr.mxu0 0.0
        %812 = vmatpush1.msra.mxu0 0.0
        %813 = vmatprep.subr.mxu0 0.0
        %814 = vmatpush1.msra.mxu0 0.0
        %815 = vmatprep.subr.mxu0 0.0
        %816 = vmatpush1.msra.mxu0 0.0
        %817 = vmatprep.subr.mxu0 0.0
        %818 = vmatpush1.msra.mxu0 0.0
        %819 = vmatprep.mubr.f32.mxu0 0.0
        %820 = vmatmul.mubr.f32.gmra.mrb[0].mxu0 %v744
        %v821 = vpop.f32.mrb[0].mxu0
        %v822 = vadd.f32 %v726, %v821
        %v823 = vpop.f32.mrb[0].mxu0
        %824 = vmatprep.mubr.f32.mxu0 0.0
        %825 = vmatmul.mubr.f32.gmra.mrb[0].mxu0 %v747
        %v826 = vpop.f32.mrb[0].mxu0
        %v827 = vadd.f32 %v731, %v826
        %v828 = vpop.f32.mrb[0].mxu0
        %829 = vmatprep.mubr.f32.mxu0 0.0
        %830 = vmatmul.mubr.f32.gmra.mrb[0].mxu0 %v750
        %v831 = vpop.f32.mrb[0].mxu0
        %v832 = vadd.f32 %v736, %v831
        %v833 = vpop.f32.mrb[0].mxu0
        %834 = vmatprep.mubr.f32.mxu0 0.0
        %835 = vmatmul.mubr.f32.gmra.mrb[0].mxu0 %v753
        %v836 = vpop.f32.mrb[0].mxu0
        %v837 = vadd.f32 %v741, %v836
        %v838 = vpop.f32.mrb[0].mxu0
        %839 = vdwg.mxu0
        %v840 = vtanh.pop %v822
        %v841 = vtanh.pop %v827
        %v842 = vtanh.pop %v832
        %v843 = vtanh.pop %v837
        %s844 = scalar_lea.vmem %s2, 96
        %v845 = vld [vmem:[%s844] sm:$0xff]
        %v846 = vld [vmem:[%s844 + $0x8] sm:$0xff]
        %v847 = vld [vmem:[%s844 + $0x10] sm:$0xff]
        %v848 = vld [vmem:[%s844 + $0x18] sm:$0xff]
        %s849 = scalar_lea.vmem %s3, 128
        %v850 = vld [vmem:[%s849] sm:$0xff]
        %v851 = vld [vmem:[%s849 + $0x8] sm:$0xff]
        %v852 = vld [vmem:[%s849 + $0x10] sm:$0xff]
        %v853 = vld [vmem:[%s849 + $0x18] sm:$0xff]
        %855 = vset.pattern.permute.xlu0 0
        %856 = vperm.xlu0 %855, %v850
        %v857 = vpop.permute.xlu0 %856
        %860 = vset.pattern.permute.xlu0 0
        %861 = vperm.xlu0 %860, %v851
        %v862 = vpop.permute.xlu0 %861
        %865 = vset.pattern.permute.xlu0 0
        %866 = vperm.xlu0 %865, %v852
        %v867 = vpop.permute.xlu0 %866
        %870 = vset.pattern.permute.xlu0 0
        %871 = vperm.xlu0 %870, %v853
        %v872 = vpop.permute.xlu0 %871
        %v875 = vsel %vm476, %v845, 0
        %v878 = vsel %vm476, %v846, 0
        %v881 = vsel %vm476, %v847, 0
        %v884 = vsel %vm476, %v848, 0
        %886 = vmatprep.subr.mxu0 0.0
        %887 = vmatpush1.msra.mxu0 %v840
        %888 = vmatprep.subr.mxu0 0.0
        %889 = vmatpush1.msra.mxu0 %v841
        %890 = vmatprep.subr.mxu0 0.0
        %891 = vmatpush1.msra.mxu0 %v842
        %892 = vmatprep.subr.mxu0 0.0
        %893 = vmatpush1.msra.mxu0 %v843
        %894 = vmatprep.subr.mxu0 0.0
        %895 = vmatpush1.msra.mxu0 0.0
        %896 = vmatprep.subr.mxu0 0.0
        %897 = vmatpush1.msra.mxu0 0.0
        %898 = vmatprep.subr.mxu0 0.0
        %899 = vmatpush1.msra.mxu0 0.0
        %900 = vmatprep.subr.mxu0 0.0
        %901 = vmatpush1.msra.mxu0 0.0
        %902 = vmatprep.subr.mxu0 0.0
        %903 = vmatpush1.msra.mxu0 0.0
        %904 = vmatprep.subr.mxu0 0.0
        %905 = vmatpush1.msra.mxu0 0.0
        %906 = vmatprep.subr.mxu0 0.0
        %907 = vmatpush1.msra.mxu0 0.0
        %908 = vmatprep.subr.mxu0 0.0
        %909 = vmatpush1.msra.mxu0 0.0
        %910 = vmatprep.subr.mxu0 0.0
        %911 = vmatpush1.msra.mxu0 0.0
        %912 = vmatprep.subr.mxu0 0.0
        %913 = vmatpush1.msra.mxu0 0.0
        %914 = vmatprep.subr.mxu0 0.0
        %915 = vmatpush1.msra.mxu0 0.0
        %916 = vmatprep.subr.mxu0 0.0
        %917 = vmatpush1.msra.mxu0 0.0
        %918 = vmatprep.subr.mxu0 0.0
        %919 = vmatpush1.msra.mxu0 0.0
        %920 = vmatprep.subr.mxu0 0.0
        %921 = vmatpush1.msra.mxu0 0.0
        %922 = vmatprep.subr.mxu0 0.0
        %923 = vmatpush1.msra.mxu0 0.0
        %924 = vmatprep.subr.mxu0 0.0
        %925 = vmatpush1.msra.mxu0 0.0
        %926 = vmatprep.subr.mxu0 0.0
        %927 = vmatpush1.msra.mxu0 0.0
        %928 = vmatprep.subr.mxu0 0.0
        %929 = vmatpush1.msra.mxu0 0.0
        %930 = vmatprep.subr.mxu0 0.0
        %931 = vmatpush1.msra.mxu0 0.0
        %932 = vmatprep.subr.mxu0 0.0
        %933 = vmatpush1.msra.mxu0 0.0
        %934 = vmatprep.subr.mxu0 0.0
        %935 = vmatpush1.msra.mxu0 0.0
        %936 = vmatprep.subr.mxu0 0.0
        %937 = vmatpush1.msra.mxu0 0.0
        %938 = vmatprep.subr.mxu0 0.0
        %939 = vmatpush1.msra.mxu0 0.0
        %940 = vmatprep.subr.mxu0 0.0
        %941 = vmatpush1.msra.mxu0 0.0
        %942 = vmatprep.subr.mxu0 0.0
        %943 = vmatpush1.msra.mxu0 0.0
        %944 = vmatprep.subr.mxu0 0.0
        %945 = vmatpush1.msra.mxu0 0.0
        %946 = vmatprep.subr.mxu0 0.0
        %947 = vmatpush1.msra.mxu0 0.0
        %948 = vmatprep.subr.mxu0 0.0
        %949 = vmatpush1.msra.mxu0 0.0
        %950 = vmatprep.mubr.f32.mxu0 0.0
        %951 = vmatmul.mubr.f32.gmra.mrb[0].mxu0 %v875
        %v952 = vpop.f32.mrb[0].mxu0
        %v953 = vadd.f32 %v857, %v952
        %v954 = vpop.f32.mrb[0].mxu0
        %955 = vmatprep.mubr.f32.mxu0 0.0
        %956 = vmatmul.mubr.f32.gmra.mrb[0].mxu0 %v878
        %v957 = vpop.f32.mrb[0].mxu0
        %v958 = vadd.f32 %v862, %v957
        %v959 = vpop.f32.mrb[0].mxu0
        %960 = vmatprep.mubr.f32.mxu0 0.0
        %961 = vmatmul.mubr.f32.gmra.mrb[0].mxu0 %v881
        %v962 = vpop.f32.mrb[0].mxu0
        %v963 = vadd.f32 %v867, %v962
        %v964 = vpop.f32.mrb[0].mxu0
        %965 = vmatprep.mubr.f32.mxu0 0.0
        %966 = vmatmul.mubr.f32.gmra.mrb[0].mxu0 %v884
        %v967 = vpop.f32.mrb[0].mxu0
        %v968 = vadd.f32 %v872, %v967
        %v969 = vpop.f32.mrb[0].mxu0
        %970 = vdwg.mxu0
        %v971 = vtanh.pop %v953
        %v972 = vtanh.pop %v958
        %v973 = vtanh.pop %v963
        %v974 = vtanh.pop %v968
        %v975 = vadd.f32 %v709, %v971
        %v976 = vadd.f32 %v710, %v972
        %v977 = vadd.f32 %v711, %v973
        %v978 = vadd.f32 %v712, %v974
        %s979 = scalar_lea.vmem %s2, 128
        %v980 = vld [vmem:[%s979] sm:$0xff]
        %v981 = vld [vmem:[%s979 + $0x8] sm:$0xff]
        %v982 = vld [vmem:[%s979 + $0x10] sm:$0xff]
        %v983 = vld [vmem:[%s979 + $0x18] sm:$0xff]
        %s984 = scalar_lea.vmem %s3, 160
        %v985 = vld [vmem:[%s984] sm:$0xff]
        %v986 = vld [vmem:[%s984 + $0x8] sm:$0xff]
        %v987 = vld [vmem:[%s984 + $0x10] sm:$0xff]
        %v988 = vld [vmem:[%s984 + $0x18] sm:$0xff]
        %990 = vset.pattern.permute.xlu0 0
        %991 = vperm.xlu0 %990, %v985
        %v992 = vpop.permute.xlu0 %991
        %995 = vset.pattern.permute.xlu0 0
        %996 = vperm.xlu0 %995, %v986
        %v997 = vpop.permute.xlu0 %996
        %1000 = vset.pattern.permute.xlu0 0
        %1001 = vperm.xlu0 %1000, %v987
        %v1002 = vpop.permute.xlu0 %1001
        %1005 = vset.pattern.permute.xlu0 0
        %1006 = vperm.xlu0 %1005, %v988
        %v1007 = vpop.permute.xlu0 %1006
        %v1010 = vsel %vm476, %v980, 0
        %v1013 = vsel %vm476, %v981, 0
        %v1016 = vsel %vm476, %v982, 0
        %v1019 = vsel %vm476, %v983, 0
        %1021 = vmatprep.subr.mxu0 0.0
        %1022 = vmatpush1.msra.mxu0 %v975
        %1023 = vmatprep.subr.mxu0 0.0
        %1024 = vmatpush1.msra.mxu0 %v976
        %1025 = vmatprep.subr.mxu0 0.0
        %1026 = vmatpush1.msra.mxu0 %v977
        %1027 = vmatprep.subr.mxu0 0.0
        %1028 = vmatpush1.msra.mxu0 %v978
        %1029 = vmatprep.subr.mxu0 0.0
        %1030 = vmatpush1.msra.mxu0 0.0
        %1031 = vmatprep.subr.mxu0 0.0
        %1032 = vmatpush1.msra.mxu0 0.0
        %1033 = vmatprep.subr.mxu0 0.0
        %1034 = vmatpush1.msra.mxu0 0.0
        %1035 = vmatprep.subr.mxu0 0.0
        %1036 = vmatpush1.msra.mxu0 0.0
        %1037 = vmatprep.subr.mxu0 0.0
        %1038 = vmatpush1.msra.mxu0 0.0
        %1039 = vmatprep.subr.mxu0 0.0
        %1040 = vmatpush1.msra.mxu0 0.0
        %1041 = vmatprep.subr.mxu0 0.0
        %1042 = vmatpush1.msra.mxu0 0.0
        %1043 = vmatprep.subr.mxu0 0.0
        %1044 = vmatpush1.msra.mxu0 0.0
        %1045 = vmatprep.subr.mxu0 0.0
        %1046 = vmatpush1.msra.mxu0 0.0
        %1047 = vmatprep.subr.mxu0 0.0
        %1048 = vmatpush1.msra.mxu0 0.0
        %1049 = vmatprep.subr.mxu0 0.0
        %1050 = vmatpush1.msra.mxu0 0.0
        %1051 = vmatprep.subr.mxu0 0.0
        %1052 = vmatpush1.msra.mxu0 0.0
        %1053 = vmatprep.subr.mxu0 0.0
        %1054 = vmatpush1.msra.mxu0 0.0
        %1055 = vmatprep.subr.mxu0 0.0
        %1056 = vmatpush1.msra.mxu0 0.0
        %1057 = vmatprep.subr.mxu0 0.0
        %1058 = vmatpush1.msra.mxu0 0.0
        %1059 = vmatprep.subr.mxu0 0.0
        %1060 = vmatpush1.msra.mxu0 0.0
        %1061 = vmatprep.subr.mxu0 0.0
        %1062 = vmatpush1.msra.mxu0 0.0
        %1063 = vmatprep.subr.mxu0 0.0
        %1064 = vmatpush1.msra.mxu0 0.0
        %1065 = vmatprep.subr.mxu0 0.0
        %1066 = vmatpush1.msra.mxu0 0.0
        %1067 = vmatprep.subr.mxu0 0.0
        %1068 = vmatpush1.msra.mxu0 0.0
        %1069 = vmatprep.subr.mxu0 0.0
        %1070 = vmatpush1.msra.mxu0 0.0
        %1071 = vmatprep.subr.mxu0 0.0
        %1072 = vmatpush1.msra.mxu0 0.0
        %1073 = vmatprep.subr.mxu0 0.0
        %1074 = vmatpush1.msra.mxu0 0.0
        %1075 = vmatprep.subr.mxu0 0.0
        %1076 = vmatpush1.msra.mxu0 0.0
        %1077 = vmatprep.subr.mxu0 0.0
        %1078 = vmatpush1.msra.mxu0 0.0
        %1079 = vmatprep.subr.mxu0 0.0
        %1080 = vmatpush1.msra.mxu0 0.0
        %1081 = vmatprep.subr.mxu0 0.0
        %1082 = vmatpush1.msra.mxu0 0.0
        %1083 = vmatprep.subr.mxu0 0.0
        %1084 = vmatpush1.msra.mxu0 0.0
        %1085 = vmatprep.mubr.f32.mxu0 0.0
        %1086 = vmatmul.mubr.f32.gmra.mrb[0].mxu0 %v1010
        %v1087 = vpop.f32.mrb[0].mxu0
        %v1088 = vadd.f32 %v992, %v1087
        %v1089 = vpop.f32.mrb[0].mxu0
        %1090 = vmatprep.mubr.f32.mxu0 0.0
        %1091 = vmatmul.mubr.f32.gmra.mrb[0].mxu0 %v1013
        %v1092 = vpop.f32.mrb[0].mxu0
        %v1093 = vadd.f32 %v997, %v1092
        %v1094 = vpop.f32.mrb[0].mxu0
        %1095 = vmatprep.mubr.f32.mxu0 0.0
        %1096 = vmatmul.mubr.f32.gmra.mrb[0].mxu0 %v1016
        %v1097 = vpop.f32.mrb[0].mxu0
        %v1098 = vadd.f32 %v1002, %v1097
        %v1099 = vpop.f32.mrb[0].mxu0
        %1100 = vmatprep.mubr.f32.mxu0 0.0
        %1101 = vmatmul.mubr.f32.gmra.mrb[0].mxu0 %v1019
        %v1102 = vpop.f32.mrb[0].mxu0
        %v1103 = vadd.f32 %v1007, %v1102
        %v1104 = vpop.f32.mrb[0].mxu0
        %1105 = vdwg.mxu0
        %v1106 = vtanh.pop %v1088
        %v1107 = vtanh.pop %v1093
        %v1108 = vtanh.pop %v1098
        %v1109 = vtanh.pop %v1103
        %s1110 = scalar_lea.vmem %s2, 160
        %v1111 = vld [vmem:[%s1110] sm:$0xff]
        %v1112 = vld [vmem:[%s1110 + $0x8] sm:$0xff]
        %v1113 = vld [vmem:[%s1110 + $0x10] sm:$0xff]
        %v1114 = vld [vmem:[%s1110 + $0x18] sm:$0xff]
        %s1115 = scalar_lea.vmem %s3, 192
        %v1116 = vld [vmem:[%s1115] sm:$0xff]
        %v1117 = vld [vmem:[%s1115 + $0x8] sm:$0xff]
        %v1118 = vld [vmem:[%s1115 + $0x10] sm:$0xff]
        %v1119 = vld [vmem:[%s1115 + $0x18] sm:$0xff]
        %1121 = vset.pattern.permute.xlu0 0
        %1122 = vperm.xlu0 %1121, %v1116
        %v1123 = vpop.permute.xlu0 %1122
        %1126 = vset.pattern.permute.xlu0 0
        %1127 = vperm.xlu0 %1126, %v1117
        %v1128 = vpop.permute.xlu0 %1127
        %1131 = vset.pattern.permute.xlu0 0
        %1132 = vperm.xlu0 %1131, %v1118
        %v1133 = vpop.permute.xlu0 %1132
        %1136 = vset.pattern.permute.xlu0 0
        %1137 = vperm.xlu0 %1136, %v1119
        %v1138 = vpop.permute.xlu0 %1137
        %v1141 = vsel %vm476, %v1111, 0
        %v1144 = vsel %vm476, %v1112, 0
        %v1147 = vsel %vm476, %v1113, 0
        %v1150 = vsel %vm476, %v1114, 0
        %1152 = vmatprep.subr.mxu0 0.0
        %1153 = vmatpush1.msra.mxu0 %v1106
        %1154 = vmatprep.subr.mxu0 0.0
        %1155 = vmatpush1.msra.mxu0 %v1107
        %1156 = vmatprep.subr.mxu0 0.0
        %1157 = vmatpush1.msra.mxu0 %v1108
        %1158 = vmatprep.subr.mxu0 0.0
        %1159 = vmatpush1.msra.mxu0 %v1109
        %1160 = vmatprep.subr.mxu0 0.0
        %1161 = vmatpush1.msra.mxu0 0.0
        %1162 = vmatprep.subr.mxu0 0.0
        %1163 = vmatpush1.msra.mxu0 0.0
        %1164 = vmatprep.subr.mxu0 0.0
        %1165 = vmatpush1.msra.mxu0 0.0
        %1166 = vmatprep.subr.mxu0 0.0
        %1167 = vmatpush1.msra.mxu0 0.0
        %1168 = vmatprep.subr.mxu0 0.0
        %1169 = vmatpush1.msra.mxu0 0.0
        %1170 = vmatprep.subr.mxu0 0.0
        %1171 = vmatpush1.msra.mxu0 0.0
        %1172 = vmatprep.subr.mxu0 0.0
        %1173 = vmatpush1.msra.mxu0 0.0
        %1174 = vmatprep.subr.mxu0 0.0
        %1175 = vmatpush1.msra.mxu0 0.0
        %1176 = vmatprep.subr.mxu0 0.0
        %1177 = vmatpush1.msra.mxu0 0.0
        %1178 = vmatprep.subr.mxu0 0.0
        %1179 = vmatpush1.msra.mxu0 0.0
        %1180 = vmatprep.subr.mxu0 0.0
        %1181 = vmatpush1.msra.mxu0 0.0
        %1182 = vmatprep.subr.mxu0 0.0
        %1183 = vmatpush1.msra.mxu0 0.0
        %1184 = vmatprep.subr.mxu0 0.0
        %1185 = vmatpush1.msra.mxu0 0.0
        %1186 = vmatprep.subr.mxu0 0.0
        %1187 = vmatpush1.msra.mxu0 0.0
        %1188 = vmatprep.subr.mxu0 0.0
        %1189 = vmatpush1.msra.mxu0 0.0
        %1190 = vmatprep.subr.mxu0 0.0
        %1191 = vmatpush1.msra.mxu0 0.0
        %1192 = vmatprep.subr.mxu0 0.0
        %1193 = vmatpush1.msra.mxu0 0.0
        %1194 = vmatprep.subr.mxu0 0.0
        %1195 = vmatpush1.msra.mxu0 0.0
        %1196 = vmatprep.subr.mxu0 0.0
        %1197 = vmatpush1.msra.mxu0 0.0
        %1198 = vmatprep.subr.mxu0 0.0
        %1199 = vmatpush1.msra.mxu0 0.0
        %1200 = vmatprep.subr.mxu0 0.0
        %1201 = vmatpush1.msra.mxu0 0.0
        %1202 = vmatprep.subr.mxu0 0.0
        %1203 = vmatpush1.msra.mxu0 0.0
        %1204 = vmatprep.subr.mxu0 0.0
        %1205 = vmatpush1.msra.mxu0 0.0
        %1206 = vmatprep.subr.mxu0 0.0
        %1207 = vmatpush1.msra.mxu0 0.0
        %1208 = vmatprep.subr.mxu0 0.0
        %1209 = vmatpush1.msra.mxu0 0.0
        %1210 = vmatprep.subr.mxu0 0.0
        %1211 = vmatpush1.msra.mxu0 0.0
        %1212 = vmatprep.subr.mxu0 0.0
        %1213 = vmatpush1.msra.mxu0 0.0
        %1214 = vmatprep.subr.mxu0 0.0
        %1215 = vmatpush1.msra.mxu0 0.0
        %1216 = vmatprep.mubr.f32.mxu0 0.0
        %1217 = vmatmul.mubr.f32.gmra.mrb[0].mxu0 %v1141
        %v1218 = vpop.f32.mrb[0].mxu0
        %v1219 = vadd.f32 %v1123, %v1218
        %v1220 = vpop.f32.mrb[0].mxu0
        %1221 = vmatprep.mubr.f32.mxu0 0.0
        %1222 = vmatmul.mubr.f32.gmra.mrb[0].mxu0 %v1144
        %v1223 = vpop.f32.mrb[0].mxu0
        %v1224 = vadd.f32 %v1128, %v1223
        %v1225 = vpop.f32.mrb[0].mxu0
        %1226 = vmatprep.mubr.f32.mxu0 0.0
        %1227 = vmatmul.mubr.f32.gmra.mrb[0].mxu0 %v1147
        %v1228 = vpop.f32.mrb[0].mxu0
        %v1229 = vadd.f32 %v1133, %v1228
        %v1230 = vpop.f32.mrb[0].mxu0
        %1231 = vmatprep.mubr.f32.mxu0 0.0
        %1232 = vmatmul.mubr.f32.gmra.mrb[0].mxu0 %v1150
        %v1233 = vpop.f32.mrb[0].mxu0
        %v1234 = vadd.f32 %v1138, %v1233
        %v1235 = vpop.f32.mrb[0].mxu0
        %1236 = vdwg.mxu0
        %v1237 = vtanh.pop %v1219
        %v1238 = vtanh.pop %v1224
        %v1239 = vtanh.pop %v1229
        %v1240 = vtanh.pop %v1234
        %v1241 = vadd.f32 %v975, %v1237
        %v1242 = vadd.f32 %v976, %v1238
        %v1243 = vadd.f32 %v977, %v1239
        %v1244 = vadd.f32 %v978, %v1240
        %v1245 = vld [vmem:[%s4] sm:$0x1]
        %v1246 = vld [vmem:[#allocation2] sm:$0x1]
        %1248 = vset.pattern.permute.xlu0 0
        %1249 = vperm.xlu0 %1248, %v1246
        %v1250 = vpop.permute.xlu0 %1249
        %v1252 = vlaneseq
        %v1253 = vshrl.u32 %v1252, 7
        %v1254 = vsub.s32 0, %v1253
        %v1255 = vrot.slane %v1250, %v1254
        %v1257 = vsel %vm476, %v1245, 0
        %1259 = vmatprep.subr.mxu0 0.0
        %1260 = vmatpush1.msra.mxu0 %v1241
        %1261 = vmatprep.subr.mxu0 0.0
        %1262 = vmatpush1.msra.mxu0 %v1242
        %1263 = vmatprep.subr.mxu0 0.0
        %1264 = vmatpush1.msra.mxu0 %v1243
        %1265 = vmatprep.subr.mxu0 0.0
        %1266 = vmatpush1.msra.mxu0 %v1244
        %1267 = vmatprep.subr.mxu0 0.0
        %1268 = vmatpush1.msra.mxu0 0.0
        %1269 = vmatprep.subr.mxu0 0.0
        %1270 = vmatpush1.msra.mxu0 0.0
        %1271 = vmatprep.subr.mxu0 0.0
        %1272 = vmatpush1.msra.mxu0 0.0
        %1273 = vmatprep.subr.mxu0 0.0
        %1274 = vmatpush1.msra.mxu0 0.0
        %1275 = vmatprep.subr.mxu0 0.0
        %1276 = vmatpush1.msra.mxu0 0.0
        %1277 = vmatprep.subr.mxu0 0.0
        %1278 = vmatpush1.msra.mxu0 0.0
        %1279 = vmatprep.subr.mxu0 0.0
        %1280 = vmatpush1.msra.mxu0 0.0
        %1281 = vmatprep.subr.mxu0 0.0
        %1282 = vmatpush1.msra.mxu0 0.0
        %1283 = vmatprep.subr.mxu0 0.0
        %1284 = vmatpush1.msra.mxu0 0.0
        %1285 = vmatprep.subr.mxu0 0.0
        %1286 = vmatpush1.msra.mxu0 0.0
        %1287 = vmatprep.subr.mxu0 0.0
        %1288 = vmatpush1.msra.mxu0 0.0
        %1289 = vmatprep.subr.mxu0 0.0
        %1290 = vmatpush1.msra.mxu0 0.0
        %1291 = vmatprep.subr.mxu0 0.0
        %1292 = vmatpush1.msra.mxu0 0.0
        %1293 = vmatprep.subr.mxu0 0.0
        %1294 = vmatpush1.msra.mxu0 0.0
        %1295 = vmatprep.subr.mxu0 0.0
        %1296 = vmatpush1.msra.mxu0 0.0
        %1297 = vmatprep.subr.mxu0 0.0
        %1298 = vmatpush1.msra.mxu0 0.0
        %1299 = vmatprep.subr.mxu0 0.0
        %1300 = vmatpush1.msra.mxu0 0.0
        %1301 = vmatprep.subr.mxu0 0.0
        %1302 = vmatpush1.msra.mxu0 0.0
        %1303 = vmatprep.subr.mxu0 0.0
        %1304 = vmatpush1.msra.mxu0 0.0
        %1305 = vmatprep.subr.mxu0 0.0
        %1306 = vmatpush1.msra.mxu0 0.0
        %1307 = vmatprep.subr.mxu0 0.0
        %1308 = vmatpush1.msra.mxu0 0.0
        %1309 = vmatprep.subr.mxu0 0.0
        %1310 = vmatpush1.msra.mxu0 0.0
        %1311 = vmatprep.subr.mxu0 0.0
        %1312 = vmatpush1.msra.mxu0 0.0
        %1313 = vmatprep.subr.mxu0 0.0
        %1314 = vmatpush1.msra.mxu0 0.0
        %1315 = vmatprep.subr.mxu0 0.0
        %1316 = vmatpush1.msra.mxu0 0.0
        %1317 = vmatprep.subr.mxu0 0.0
        %1318 = vmatpush1.msra.mxu0 0.0
        %1319 = vmatprep.subr.mxu0 0.0
        %1320 = vmatpush1.msra.mxu0 0.0
        %1321 = vmatprep.subr.mxu0 0.0
        %1322 = vmatpush1.msra.mxu0 0.0
        %1323 = vmatprep.mubr.f32.mxu0 0.0
        %1324 = vmatmul.mubr.f32.gmra.mrb[0].mxu0 %v1257
        %v1325 = vpop.f32.mrb[0].mxu0
        %v1326 = vadd.f32 %v1255, %v1325
        %v1327 = vpop.f32.mrb[0].mxu0
        %1328 = vdwg.mxu0
        %1329 = vst [vmem:[%s246] sm:$0x1] %v1326
        %s1330 = sand.u32 %s161, 1
        %s1331 = scalar_lea.sflag [#allocation4], %s1330
        %s1332 = sand.u32 %s161, 1
        %s1333 = scalar_lea.vmem [#allocation3], %s1332
        // Predicated region
        $region45: #{deep_ritz_forward.1} parent=43 // pred_check
          %p1334 = pneg %p171
        $region46: #{deep_ritz_forward.1} parent=43 // pred_check_branch
          %1336 = sbr.rel (%p1334) target = $region48
        $region47: #{deep_ritz_forward.1} parent=43 // pred_region
          %s1338 = ssub.s32 16, 16
          %1339 = vsyncadd %s1331, %s1338
          %s1340 = smul.addr %s22, 16
          %s1341 = scalar_lea.hbm %s6, %s1340
          %s1343 = sshll.u32 %s1333, 4
          %s1344 = int_to_ptr.vmem [resolvable:$true] %s1343
          %1346 = dma.vmem_to_hbm [thread:$0]  %s1344, 16, %s1341, %s1331
        $region48: #{deep_ritz_forward.1} parent=43 // pred_fallthru
          _
      $region44: #{deep_ritz_forward.1} parent=5 // pred_fallthru
        _
      %p1347 = scmp.le.s32.totalorder 2, %s17
      // Predicated region
      $region49: #{deep_ritz_forward.1} parent=5 // pred_check
        %p1348 = pneg %p1347
      $region50: #{deep_ritz_forward.1} parent=5 // pred_check_branch
        %1350 = sbr.rel (%p1348) target = $region52
      $region51: #{deep_ritz_forward.1} parent=5 // pred_region
        %s1351 = ssub.s32 %s17, 2
        // Predicated region
        $region53: #{deep_ritz_forward.1} parent=51 // pred_check
          %p1352 = pneg %p177
        $region54: #{deep_ritz_forward.1} parent=51 // pred_check_branch
          %1354 = sbr.rel (%p1352) target = $region56
        $region55: #{deep_ritz_forward.1} parent=51 // pred_region
          %s1355 = sand.u32 %s162, 1
          %s1356 = scalar_lea.sflag [#allocation4], %s1355
          %s1357 = sand.u32 %s162, 1
          %s1358 = scalar_lea.vmem [#allocation3], %s1357
          %1359 = dma.done %s1356, 16
        $region56: #{deep_ritz_forward.1} parent=51 // pred_fallthru
          _
      $region52: #{deep_ritz_forward.1} parent=5 // pred_fallthru
        _
    $region6: #{deep_ritz_forward.1} parent=1 // loop_footer
      %s21 = sadd.s32 1, %s17
    $region7: #{deep_ritz_forward.1} parent=1 // loop_footer_branch
      %16 = sbr.rel target = $region3
    $region8: #{deep_ritz_forward.1} parent=1 // loop_exit
      _
    %1360 = vsyncpa [#allocation4], 1
    %s1361 = scalar_lea.sflag [#allocation4], 1
    %1362 = vsyncpa %s1361, 1

</llo_original>
